<compile_context>
chip_gen: v5e
topology: v5e:2x2
jax: 0.10.0
libtpu: 0.0.40
codegen_flags: <defaults>
</compile_context>

<pallas_src>
import functools
import math

import jax
import jax.numpy as jnp
from jax import lax
from jax.experimental import pallas as pl
from jax.experimental.pallas import tpu as pltpu


# MXU operand dtype; accumulation is always f32 via preferred_element_type.
MXU_DTYPE = jnp.bfloat16
_MXU_BYTES = 2


@functools.lru_cache(maxsize=None)
def _vmem_capacity_bytes():
    """Physical per-core VMEM (128 MiB v5e/v6e, 64 MiB v7x); safe fallback."""
    try:
        info = pltpu.get_tpu_info()
        cap = int(getattr(info, "vmem_capacity_bytes", 0) or 0)
        if cap > 0:
            return cap
    except Exception:
        pass
    return 64 * 1024 * 1024  # conservative (v7x-sized) default


@functools.lru_cache(maxsize=None)
def _vmem_limit_bytes():
    # Leave headroom for compiler scratch: ~50 MiB on v7x, ~100 MiB on v5e/v6e.
    return int(_vmem_capacity_bytes() * 0.78)


def _small_vmem():
    return _vmem_capacity_bytes() <= 96 * 1024 * 1024


def _mosaic_params(dimension_semantics):
    return pltpu.CompilerParams(
        dimension_semantics=dimension_semantics,
        vmem_limit_bytes=_vmem_limit_bytes(),
    )


def _pick_tile(dim, preferred, align):
    """Largest divisor of `dim` that is <= `preferred` and a multiple of `align`;
    falls back to the full dim (full-dim blocks always satisfy TPU tiling)."""
    if dim <= preferred:
        return dim
    cand = (preferred // align) * align
    while cand >= align:
        if dim % cand == 0:
            return cand
        cand -= align
    return dim


# ----------------------------------------------------------------------------
# Kernel 1: fused Q/K/V linear projections (weight-resident grid order).
#   grid = (Dout//tn, B, T//tm): the W_{q,k,v} block index only changes on the
#   OUTER axis, so each (D, tn) bf16 weight block is DMA'd once per n-tile.
# ----------------------------------------------------------------------------
def _qkv_kernel(n_x, *refs):
    x_refs = refs[:n_x]
    wq_ref, wk_ref, wv_ref, bq_ref, bk_ref, bv_ref = refs[n_x:n_x + 6]
    q_ref, k_ref, v_ref = refs[n_x + 6:n_x + 9]

    if n_x == 1:                                   # shared self-attention input
        xq = xk = xv = x_refs[0][0].astype(MXU_DTYPE)
    else:
        xq = x_refs[0][0].astype(MXU_DTYPE)
        xk = x_refs[1][0].astype(MXU_DTYPE)
        xv = x_refs[2][0].astype(MXU_DTYPE)

    def proj(x, w_ref, b_ref, o_ref):
        y = jnp.dot(x, w_ref[...].astype(MXU_DTYPE),
                    preferred_element_type=jnp.float32)
        o_ref[0] = (y + b_ref[...].astype(jnp.float32)).astype(o_ref.dtype)

    proj(xq, wq_ref, bq_ref, q_ref)
    proj(xk, wk_ref, bk_ref, k_ref)
    proj(xv, wv_ref, bv_ref, v_ref)


def qkv_projection(query, key, value, wq, wk, wv, bq, bk, bv, *,
                   shared=False, tm_target=None):
    B, T, D = query.shape
    Dout = wq.shape[1]
    if tm_target is None:
        tm_target = 256 if _small_vmem() else 512
    # Column tile so the 3 double-buffered (D, tn) bf16 weight blocks fit ~1/4 budget.
    tn_target = max(128, _vmem_limit_bytes() // (4 * 3 * 2 * D * _MXU_BYTES))
    tm = _pick_tile(T, tm_target, 16)      # bf16 outputs -> sublane multiple of 16
    tn = _pick_tile(Dout, tn_target, 128)
    grid = (Dout // tn, B, T // tm)

    x_spec = pl.BlockSpec((1, tm, D), lambda n, b, i: (b, i, 0))
    w_spec = pl.BlockSpec((D, tn), lambda n, b, i: (0, n))      # resident within n
    bias_spec = pl.BlockSpec((1, tn), lambda n, b, i: (0, n))
    o_spec = pl.BlockSpec((1, tm, tn), lambda n, b, i: (b, i, n))
    o_shape = jax.ShapeDtypeStruct((B, T, Dout), MXU_DTYPE)     # bf16 intermediates

    if shared:
        inputs = (query,)
        in_specs = [x_spec]
    else:
        inputs = (query, key, value)
        in_specs = [x_spec, x_spec, x_spec]

    kernel = functools.partial(_qkv_kernel, len(inputs))
    return pl.pallas_call(
        kernel,
        out_shape=(o_shape, o_shape, o_shape),
        grid_spec=pltpu.PrefetchScalarGridSpec(
            num_scalar_prefetch=0,
            grid=grid,
            in_specs=in_specs + [w_spec, w_spec, w_spec,
                                 bias_spec, bias_spec, bias_spec],
            out_specs=(o_spec, o_spec, o_spec),
        ),
        compiler_params=_mosaic_params(("parallel", "parallel", "parallel")),
    )(*inputs, wq, wk, wv, bq, bk, bv)


# ----------------------------------------------------------------------------
# Kernel 2: scaled dot-product attention, tiled over the query axis.
#   grid = (B*H, T//tq); K/V blocks keep a constant index along the tq axis so
#   they stay VMEM-resident while q tiles stream.
# ----------------------------------------------------------------------------
def _attn_kernel(scale, return_attn, lane_dense, q_ref, k_ref, v_ref, *out_refs):
    if return_attn:
        ctx_ref, attn_ref = out_refs
    else:
        (ctx_ref,) = out_refs

    # Fold softmax scale into q (tq*d multiplies instead of tq*T).
    q = (q_ref[0].astype(jnp.float32) * scale).astype(MXU_DTYPE)
    k = k_ref[0].astype(MXU_DTYPE)
    v = v_ref[0].astype(MXU_DTYPE)

    # q @ k^T without materializing a transpose: contract the last axes.
    s = lax.dot_general(q, k, (((1,), (1,)), ((), ())),
                        preferred_element_type=jnp.float32)        # (tq, T), f32
    s_max = jnp.max(s, axis=-1, keepdims=True)
    e = jnp.exp(s - s_max)                                         # f32 (EUP/VPU)
    denom = jnp.sum(e, axis=-1, keepdims=True)

    if return_attn:
        # attn is user-visible: use the exact reciprocal, keep it f32.
        p = e * pl.reciprocal(denom)
        attn_ref[0] = p.astype(attn_ref.dtype)
        ctx = jnp.dot(p.astype(MXU_DTYPE), v, preferred_element_type=jnp.float32)
    else:
        # Normalize AFTER the PV matmul: tq*d multiplies instead of tq*T.
        ctx = jnp.dot(e.astype(MXU_DTYPE), v, preferred_element_type=jnp.float32)
        ctx = ctx * pl.reciprocal(denom, approx=True)              # EUP slot

    if lane_dense:
        # Repack the (tq, d) tile to a lane-dense (rows, 128) layout (XLU slack);
        # the wrapper's flat reshape back to (B, T, D) is free.
        ctx = ctx.reshape(-1, 128)
    ctx_ref[0] = ctx.astype(ctx_ref.dtype)


def scaled_dot_product_attention(q, k, v, scale, *, return_attn=True,
                                 tq_target=None):
    BH, T, d = q.shape
    if tq_target is None:
        tq_target = 128 if _small_vmem() else 256   # tighter tiles on v7x
    tq = _pick_tile(T, tq_target, 16)
    rows = (tq * d) // 128
    # Lane-dense ctx only when the repacked block satisfies bf16 tiling rules.
    lane_dense = (tq * d) % 128 == 0 and (tq == T or rows % 16 == 0)
    grid = (BH, T // tq)

    q_spec = pl.BlockSpec((1, tq, d), lambda b, i: (b, i, 0))
    kv_spec = pl.BlockSpec((1, T, d), lambda b, i: (b, 0, 0))      # resident along i

    if lane_dense:
        ctx_shape = jax.ShapeDtypeStruct((BH, (T * d) // 128, 128), MXU_DTYPE)
        ctx_spec = pl.BlockSpec((1, rows, 128), lambda b, i: (b, i, 0))
    else:
        ctx_shape = jax.ShapeDtypeStruct((BH, T, d), MXU_DTYPE)
        ctx_spec = pl.BlockSpec((1, tq, d), lambda b, i: (b, i, 0))

    out_shape = [ctx_shape]
    out_specs = [ctx_spec]
    if return_attn:
        # attn stays f32 (API-preserving); skip it entirely when not consumed.
        out_shape.append(jax.ShapeDtypeStruct((BH, T, T), jnp.float32))
        out_specs.append(pl.BlockSpec((1, tq, T), lambda b, i: (b, i, 0)))

    kernel = functools.partial(_attn_kernel, scale, return_attn, lane_dense)
    outs = pl.pallas_call(
        kernel,
        out_shape=tuple(out_shape),
        grid_spec=pltpu.PrefetchScalarGridSpec(
            num_scalar_prefetch=0,
            grid=grid,
            in_specs=[q_spec, kv_spec, kv_spec],
            out_specs=tuple(out_specs),
        ),
        compiler_params=_mosaic_params(("parallel", "parallel")),
    )(q, k, v)
    if return_attn:
        return outs[0], outs[1]
    return outs[0], None


# ----------------------------------------------------------------------------
# Kernel 3: final linear + residual + LayerNorm.
#   Preferred path: W_final bf16 fully VMEM-resident (constant index_map),
#   grid = (B, T//tm), no accumulator. K-blocked fallback for very large D.
# ----------------------------------------------------------------------------
def _final_kernel_resident(ctx_ref, res_ref, w_ref, b_ref, g_ref, beta_ref, o_ref):
    y = jnp.dot(ctx_ref[0].astype(MXU_DTYPE), w_ref[...].astype(MXU_DTYPE),
                preferred_element_type=jnp.float32)
    y = y + b_ref[...].astype(jnp.float32)
    x = res_ref[0].astype(jnp.float32) + y              # residual + linear_final
    mean = jnp.mean(x, axis=-1, keepdims=True)
    var = jnp.mean((x - mean) ** 2, axis=-1, keepdims=True)
    xn = (x - mean) * lax.rsqrt(var + 1e-5)
    o_ref[0] = (xn * g_ref[...].astype(jnp.float32)
                + beta_ref[...].astype(jnp.float32)).astype(o_ref.dtype)


def _final_kernel_kblocked(ctx_ref, res_ref, w_ref, b_ref, g_ref, beta_ref,
                           o_ref, acc_ref):
    kk = pl.program_id(2)

    @pl.when(kk == 0)
    def _():
        acc_ref[...] = jnp.zeros_like(acc_ref)

    acc_ref[...] += jnp.dot(ctx_ref[0].astype(MXU_DTYPE),
                            w_ref[...].astype(MXU_DTYPE),
                            preferred_element_type=jnp.float32)

    @pl.when(kk == pl.num_programs(2) - 1)
    def _():
        y = acc_ref[...] + b_ref[...].astype(jnp.float32)
        x = res_ref[0].astype(jnp.float32) + y
        mean = jnp.mean(x, axis=-1, keepdims=True)
        var = jnp.mean((x - mean) ** 2, axis=-1, keepdims=True)
        xn = (x - mean) * lax.rsqrt(var + 1e-5)
        o_ref[0] = (xn * g_ref[...].astype(jnp.float32)
                    + beta_ref[...].astype(jnp.float32)).astype(o_ref.dtype)


def final_residual_layernorm(ctx, residual, w, b, gamma, beta, *, tm_target=None):
    B, T, Din = ctx.shape
    Dout = w.shape[1]
    if tm_target is None:
        tm_target = 256 if _small_vmem() else 512
    tm = _pick_tile(T, tm_target, 16)

    # Resident path whenever the double-buffered bf16 weight fits ~1/3 of budget.
    resident = 2 * Din * Dout * _MXU_BYTES <= _vmem_limit_bytes() // 3
    if resident:
        grid = (B, T // tm)
        return pl.pallas_call(
            _final_kernel_resident,
            out_shape=jax.ShapeDtypeStruct((B, T, Dout), residual.dtype),
            grid_spec=pltpu.PrefetchScalarGridSpec(
                num_scalar_prefetch=0,
                grid=grid,
                in_specs=[
                    pl.BlockSpec((1, tm, Din), lambda b, i: (b, i, 0)),   # ctx (bf16)
                    pl.BlockSpec((1, tm, Dout), lambda b, i: (b, i, 0)),  # residual
                    pl.BlockSpec((Din, Dout), lambda b, i: (0, 0)),       # W resident
                    pl.BlockSpec((1, Dout), lambda b, i: (0, 0)),         # bias
                    pl.BlockSpec((1, Dout), lambda b, i: (0, 0)),         # gamma
                    pl.BlockSpec((1, Dout), lambda b, i: (0, 0)),         # beta
                ],
                out_specs=pl.BlockSpec((1, tm, Dout), lambda b, i: (b, i, 0)),
            ),
            compiler_params=_mosaic_params(("parallel", "parallel")),
        )(ctx, residual, w, b, gamma, beta)

    # TODO(synk): K-blocked fallback (huge D) still re-streams W_final per row-tile;
    # a two-pass (GEMM then LN) scheme would avoid that but loses the fusion.
    tk_target = max(128, _vmem_limit_bytes() // (4 * 2 * Dout * _MXU_BYTES))
    tk = _pick_tile(Din, tk_target, 128)
    grid = (B, T // tm, Din // tk)
    return pl.pallas_call(
        _final_kernel_kblocked,
        out_shape=jax.ShapeDtypeStruct((B, T, Dout), residual.dtype),
        grid_spec=pltpu.PrefetchScalarGridSpec(
            num_scalar_prefetch=0,
            grid=grid,
            in_specs=[
                pl.BlockSpec((1, tm, tk), lambda b, i, k: (b, i, k)),
                pl.BlockSpec((1, tm, Dout), lambda b, i, k: (b, i, 0)),
                pl.BlockSpec((tk, Dout), lambda b, i, k: (k, 0)),
                pl.BlockSpec((1, Dout), lambda b, i, k: (0, 0)),
                pl.BlockSpec((1, Dout), lambda b, i, k: (0, 0)),
                pl.BlockSpec((1, Dout), lambda b, i, k: (0, 0)),
            ],
            out_specs=pl.BlockSpec((1, tm, Dout), lambda b, i, k: (b, i, 0)),
            scratch_shapes=[pltpu.VMEM((tm, Dout), jnp.float32)],
        ),
        compiler_params=_mosaic_params(("parallel", "parallel", "arbitrary")),
    )(ctx, residual, w, b, gamma, beta)


# ----------------------------------------------------------------------------
# Python wrapper reproducing MultiHeadAttention.forward
# ----------------------------------------------------------------------------
def multi_head_attention(query, key, value, params, num_heads, *, return_attn=True):
    B, T, D = query.shape
    dim_per_head = D // num_heads
    residual = query

    # Pre-cast weights to bf16 once (MXU operand dtype): halves weight HBM/VMEM.
    wq = params["wq"].astype(MXU_DTYPE)
    wk = params["wk"].astype(MXU_DTYPE)
    wv = params["wv"].astype(MXU_DTYPE)
    wf = params["wf"].astype(MXU_DTYPE)

    shared = (key is query) and (value is query)    # self-attention: stream x once
    q, k, v = qkv_projection(query, key, value, wq, wk, wv,
                             params["bq"], params["bk"], params["bv"],
                             shared=shared)

    # exactly mirrors torch .view(batch*num_heads, -1, dim_per_head) (no transpose)
    q = q.reshape(B * num_heads, T, dim_per_head)
    k = k.reshape(B * num_heads, T, dim_per_head)
    v = v.reshape(B * num_heads, T, dim_per_head)

    # Reference quirk: integer floor division (raises like the reference if
    # dim_per_head < num_heads).
    scale = float((dim_per_head // num_heads) ** (-0.5))

    context, attn = scaled_dot_product_attention(q, k, v, scale,
                                                 return_attn=return_attn)
    # Raw flat reshape back — valid for both the lane-dense and plain ctx layouts.
    context = context.reshape(B, T, D)

    # TODO(synk): attn_mask (None in reference default) and dropout (p=0.0,
    # identity) are omitted.
    output = final_residual_layernorm(
        context, residual, wf, params["bf"], params["gamma"], params["beta"])
    return output, attn


# ----------------------------------------------------------------------------
# Pure-JAX f32 reference (loose self-check; kernels use bf16 MXU operands)
# ----------------------------------------------------------------------------
def _reference(query, key, value, params, num_heads):
    B, T, D = query.shape
    d = D // num_heads
    k = key @ params["wk"] + params["bk"]
    v = value @ params["wv"] + params["bv"]
    q = query @ params["wq"] + params["bq"]
    q = q.reshape(B * num_heads, T, d)
    k = k.reshape(B * num_heads, T, d)
    v = v.reshape(B * num_heads, T, d)
    scale = (d // num_heads) ** (-0.5)
    s = jnp.einsum("bqd,bkd->bqk", q, k) * scale
    p = jax.nn.softmax(s, axis=-1)
    ctx = jnp.einsum("bqk,bkd->bqd", p, v).reshape(B, T, D)
    y = ctx @ params["wf"] + params["bf"]
    x = query + y
    mean = jnp.mean(x, axis=-1, keepdims=True)
    var = jnp.mean((x - mean) ** 2, axis=-1, keepdims=True)
    out = (x - mean) / jnp.sqrt(var + 1e-5) * params["gamma"] + params["beta"]
    return out, p


# ----------------------------------------------------------------------------
# Deterministic parameter init + smoke test
# ----------------------------------------------------------------------------
def init_params(key, model_dim):
    ks = jax.random.split(key, 8)
    bound = 1.0 / math.sqrt(model_dim)

    def lin(kw, kb):
        w = jax.random.uniform(kw, (model_dim, model_dim), jnp.float32, -bound, bound)
        b = jax.random.uniform(kb, (1, model_dim), jnp.float32, -bound, bound)
        return w, b

    wq, bq = lin(ks[0], ks[1])
    wk, bk = lin(ks[2], ks[3])
    wv, bv = lin(ks[4], ks[5])
    wf, bf = lin(ks[6], ks[7])
    return {
        "wq": wq, "bq": bq,
        "wk": wk, "bk": bk,
        "wv": wv, "bv": bv,
        "wf": wf, "bf": bf,
        # nn.LayerNorm default init
        "gamma": jnp.ones((1, model_dim), jnp.float32),
        "beta": jnp.zeros((1, model_dim), jnp.float32),
    }


if __name__ == "__main__":
    B, T, model_dim, num_heads = 2, 8, 32, 4

    root = jax.random.PRNGKey(0)
    k_params, k_q, k_k, k_v = jax.random.split(root, 4)
    params = init_params(k_params, model_dim)

    query = jax.random.normal(k_q, (B, T, model_dim), jnp.float32)
    key_in = jax.random.normal(k_k, (B, T, model_dim), jnp.float32)
    value = jax.random.normal(k_v, (B, T, model_dim), jnp.float32)

    # 1) full path, attn returned
    output, attn = multi_head_attention(query, key_in, value, params, num_heads)
    jax.block_until_ready((output, attn))
    assert output.shape == (B, T, model_dim)
    assert attn.shape == (B * num_heads, T, T)

    ref_out, ref_attn = _reference(query, key_in, value, params, num_heads)
    # Loose tolerance: bf16 MXU operands + bf16 inter-kernel intermediates.
    assert jnp.allclose(output, ref_out, atol=5e-2, rtol=5e-2), \
        f"output max err {float(jnp.max(jnp.abs(output - ref_out)))}"
    assert jnp.allclose(attn, ref_attn, atol=5e-2, rtol=5e-2), \
        f"attn max err {float(jnp.max(jnp.abs(attn - ref_attn)))}"

    # 2) fast path: attn not materialized (post-matmul normalization)
    out_fast, attn_none = multi_head_attention(query, key_in, value, params,
                                               num_heads, return_attn=False)
    jax.block_until_ready(out_fast)
    assert attn_none is None
    assert jnp.allclose(out_fast, ref_out, atol=5e-2, rtol=5e-2), \
        f"fast-path max err {float(jnp.max(jnp.abs(out_fast - ref_out)))}"

    # 3) shared self-attention path (activation streamed once in kernel 1)
    out_self, attn_self = multi_head_attention(query, query, query, params, num_heads)
    jax.block_until_ready((out_self, attn_self))
    ref_self_out, ref_self_attn = _reference(query, query, query, params, num_heads)
    assert jnp.allclose(out_self, ref_self_out, atol=5e-2, rtol=5e-2)
    assert jnp.allclose(attn_self, ref_self_attn, atol=5e-2, rtol=5e-2)

    print("KERNEL_OK")
</pallas_src>

<mosaic_0001>
module attributes {stable_mosaic.version = 11 : i64} {
  func.func @_qkv_kernel(%arg0: i32, %arg1: i32, %arg2: i32, %arg3: memref<1x8x32xf32, #tpu.memory_space<vmem>>, %arg4: memref<1x8x32xf32, #tpu.memory_space<vmem>>, %arg5: memref<1x8x32xf32, #tpu.memory_space<vmem>>, %arg6: memref<32x32xbf16, #tpu.memory_space<vmem>>, %arg7: memref<32x32xbf16, #tpu.memory_space<vmem>>, %arg8: memref<32x32xbf16, #tpu.memory_space<vmem>>, %arg9: memref<1x32xf32, #tpu.memory_space<vmem>>, %arg10: memref<1x32xf32, #tpu.memory_space<vmem>>, %arg11: memref<1x32xf32, #tpu.memory_space<vmem>>, %arg12: memref<1x8x32xbf16, #tpu.memory_space<vmem>>, %arg13: memref<1x8x32xbf16, #tpu.memory_space<vmem>>, %arg14: memref<1x8x32xbf16, #tpu.memory_space<vmem>>) attributes {dimension_semantics = [#tpu.dimension_semantics<parallel>, #tpu.dimension_semantics<parallel>, #tpu.dimension_semantics<parallel>], iteration_bounds = array<i64: 1, 2, 1>, scalar_prefetch = 0 : i64, scratch_operands = 0 : i64, tpu.core_type = #tpu.core_type<tc>, window_params = [{transform_indices = @transform_0, window_bounds = array<i64: 1, 8, 32>}, {transform_indices = @transform_1, window_bounds = array<i64: 1, 8, 32>}, {transform_indices = @transform_2, window_bounds = array<i64: 1, 8, 32>}, {transform_indices = @transform_3, window_bounds = array<i64: 32, 32>}, {transform_indices = @transform_4, window_bounds = array<i64: 32, 32>}, {transform_indices = @transform_5, window_bounds = array<i64: 32, 32>}, {transform_indices = @transform_6, window_bounds = array<i64: 1, 32>}, {transform_indices = @transform_7, window_bounds = array<i64: 1, 32>}, {transform_indices = @transform_8, window_bounds = array<i64: 1, 32>}, {transform_indices = @transform_9, window_bounds = array<i64: 1, 8, 32>}, {transform_indices = @transform_10, window_bounds = array<i64: 1, 8, 32>}, {transform_indices = @transform_11, window_bounds = array<i64: 1, 8, 32>}]} {
    %c0 = arith.constant 0 : index
    %c0_0 = arith.constant 0 : index
    %c0_1 = arith.constant 0 : index
    %0 = vector.load %arg3[%c0, %c0_0, %c0_1] : memref<1x8x32xf32, #tpu.memory_space<vmem>>, vector<1x8x32xf32>
    %1 = vector.shape_cast %0 : vector<1x8x32xf32> to vector<8x32xf32>
    %2 = arith.truncf %1 : vector<8x32xf32> to vector<8x32xbf16>
    %c0_2 = arith.constant 0 : index
    %c0_3 = arith.constant 0 : index
    %c0_4 = arith.constant 0 : index
    %3 = vector.load %arg4[%c0_2, %c0_3, %c0_4] : memref<1x8x32xf32, #tpu.memory_space<vmem>>, vector<1x8x32xf32>
    %4 = vector.shape_cast %3 : vector<1x8x32xf32> to vector<8x32xf32>
    %5 = arith.truncf %4 : vector<8x32xf32> to vector<8x32xbf16>
    %c0_5 = arith.constant 0 : index
    %c0_6 = arith.constant 0 : index
    %c0_7 = arith.constant 0 : index
    %6 = vector.load %arg5[%c0_5, %c0_6, %c0_7] : memref<1x8x32xf32, #tpu.memory_space<vmem>>, vector<1x8x32xf32>
    %7 = vector.shape_cast %6 : vector<1x8x32xf32> to vector<8x32xf32>
    %8 = arith.truncf %7 : vector<8x32xf32> to vector<8x32xbf16>
    %c0_8 = arith.constant 0 : index
    %c0_9 = arith.constant 0 : index
    %9 = vector.load %arg6[%c0_8, %c0_9] : memref<32x32xbf16, #tpu.memory_space<vmem>>, vector<32x32xbf16>
    %cst = arith.constant dense<0.000000e+00> : vector<8x32xf32>
    %10 = tpu.matmul %2, %9, %cst {dimension_numbers = #tpu.dot_dimension_numbers<[1], [0], [0], [1], [0, 0, 1, 1], [], []>} : vector<8x32xbf16>, vector<32x32xbf16>, vector<8x32xf32> -> vector<8x32xf32>
    %c0_10 = arith.constant 0 : index
    %c0_11 = arith.constant 0 : index
    %11 = vector.load %arg9[%c0_10, %c0_11] : memref<1x32xf32, #tpu.memory_space<vmem>>, vector<1x32xf32>
    %12 = vector.broadcast %11 : vector<1x32xf32> to vector<8x32xf32>
    %13 = arith.addf %10, %12 : vector<8x32xf32>
    %14 = arith.truncf %13 : vector<8x32xf32> to vector<8x32xbf16>
    %c0_12 = arith.constant 0 : index
    %c0_13 = arith.constant 0 : index
    %c0_14 = arith.constant 0 : index
    %15 = vector.load %arg12[%c0_12, %c0_13, %c0_14] : memref<1x8x32xbf16, #tpu.memory_space<vmem>>, vector<1x8x32xbf16>
    %16 = vector.shape_cast %15 : vector<1x8x32xbf16> to vector<8x32xbf16>
    %17 = vector.shape_cast %14 : vector<8x32xbf16> to vector<1x8x32xbf16>
    tpu.vector_store %arg12[%c0_12, %c0_13, %c0_14], %17 {strides = array<i32>} : memref<1x8x32xbf16, #tpu.memory_space<vmem>>, vector<1x8x32xbf16>,
    %c0_15 = arith.constant 0 : index
    %c0_16 = arith.constant 0 : index
    %18 = vector.load %arg7[%c0_15, %c0_16] : memref<32x32xbf16, #tpu.memory_space<vmem>>, vector<32x32xbf16>
    %cst_17 = arith.constant dense<0.000000e+00> : vector<8x32xf32>
    %19 = tpu.matmul %5, %18, %cst_17 {dimension_numbers = #tpu.dot_dimension_numbers<[1], [0], [0], [1], [0, 0, 1, 1], [], []>} : vector<8x32xbf16>, vector<32x32xbf16>, vector<8x32xf32> -> vector<8x32xf32>
    %c0_18 = arith.constant 0 : index
    %c0_19 = arith.constant 0 : index
    %20 = vector.load %arg10[%c0_18, %c0_19] : memref<1x32xf32, #tpu.memory_space<vmem>>, vector<1x32xf32>
    %21 = vector.broadcast %20 : vector<1x32xf32> to vector<8x32xf32>
    %22 = arith.addf %19, %21 : vector<8x32xf32>
    %23 = arith.truncf %22 : vector<8x32xf32> to vector<8x32xbf16>
    %c0_20 = arith.constant 0 : index
    %c0_21 = arith.constant 0 : index
    %c0_22 = arith.constant 0 : index
    %24 = vector.load %arg13[%c0_20, %c0_21, %c0_22] : memref<1x8x32xbf16, #tpu.memory_space<vmem>>, vector<1x8x32xbf16>
    %25 = vector.shape_cast %24 : vector<1x8x32xbf16> to vector<8x32xbf16>
    %26 = vector.shape_cast %23 : vector<8x32xbf16> to vector<1x8x32xbf16>
    tpu.vector_store %arg13[%c0_20, %c0_21, %c0_22], %26 {strides = array<i32>} : memref<1x8x32xbf16, #tpu.memory_space<vmem>>, vector<1x8x32xbf16>,
    %c0_23 = arith.constant 0 : index
    %c0_24 = arith.constant 0 : index
    %27 = vector.load %arg8[%c0_23, %c0_24] : memref<32x32xbf16, #tpu.memory_space<vmem>>, vector<32x32xbf16>
    %cst_25 = arith.constant dense<0.000000e+00> : vector<8x32xf32>
    %28 = tpu.matmul %8, %27, %cst_25 {dimension_numbers = #tpu.dot_dimension_numbers<[1], [0], [0], [1], [0, 0, 1, 1], [], []>} : vector<8x32xbf16>, vector<32x32xbf16>, vector<8x32xf32> -> vector<8x32xf32>
    %c0_26 = arith.constant 0 : index
    %c0_27 = arith.constant 0 : index
    %29 = vector.load %arg11[%c0_26, %c0_27] : memref<1x32xf32, #tpu.memory_space<vmem>>, vector<1x32xf32>
    %30 = vector.broadcast %29 : vector<1x32xf32> to vector<8x32xf32>
    %31 = arith.addf %28, %30 : vector<8x32xf32>
    %32 = arith.truncf %31 : vector<8x32xf32> to vector<8x32xbf16>
    %c0_28 = arith.constant 0 : index
    %c0_29 = arith.constant 0 : index
    %c0_30 = arith.constant 0 : index
    %33 = vector.load %arg14[%c0_28, %c0_29, %c0_30] : memref<1x8x32xbf16, #tpu.memory_space<vmem>>, vector<1x8x32xbf16>
    %34 = vector.shape_cast %33 : vector<1x8x32xbf16> to vector<8x32xbf16>
    %35 = vector.shape_cast %32 : vector<8x32xbf16> to vector<1x8x32xbf16>
    tpu.vector_store %arg14[%c0_28, %c0_29, %c0_30], %35 {strides = array<i32>} : memref<1x8x32xbf16, #tpu.memory_space<vmem>>, vector<1x8x32xbf16>,
    return
  }
  func.func @transform_0(%arg0: i32, %arg1: i32, %arg2: i32) -> (i32, i32, i32) {
    %c0_i32 = arith.constant 0 : i32
    %c0_i32_0 = arith.constant 0 : i32
    return %arg1, %arg2, %c0_i32 : i32, i32, i32
  }
  func.func @transform_1(%arg0: i32, %arg1: i32, %arg2: i32) -> (i32, i32, i32) {
    %c0_i32 = arith.constant 0 : i32
    %c0_i32_0 = arith.constant 0 : i32
    return %arg1, %arg2, %c0_i32 : i32, i32, i32
  }
  func.func @transform_2(%arg0: i32, %arg1: i32, %arg2: i32) -> (i32, i32, i32) {
    %c0_i32 = arith.constant 0 : i32
    %c0_i32_0 = arith.constant 0 : i32
    return %arg1, %arg2, %c0_i32 : i32, i32, i32
  }
  func.func @transform_3(%arg0: i32, %arg1: i32, %arg2: i32) -> (i32, i32) {
    %c0_i32 = arith.constant 0 : i32
    %c0_i32_0 = arith.constant 0 : i32
    return %c0_i32, %arg0 : i32, i32
  }
  func.func @transform_4(%arg0: i32, %arg1: i32, %arg2: i32) -> (i32, i32) {
    %c0_i32 = arith.constant 0 : i32
    %c0_i32_0 = arith.constant 0 : i32
    return %c0_i32, %arg0 : i32, i32
  }
  func.func @transform_5(%arg0: i32, %arg1: i32, %arg2: i32) -> (i32, i32) {
    %c0_i32 = arith.constant 0 : i32
    %c0_i32_0 = arith.constant 0 : i32
    return %c0_i32, %arg0 : i32, i32
  }
  func.func @transform_6(%arg0: i32, %arg1: i32, %arg2: i32) -> (i32, i32) {
    %c0_i32 = arith.constant 0 : i32
    %c0_i32_0 = arith.constant 0 : i32
    return %c0_i32, %arg0 : i32, i32
  }
  func.func @transform_7(%arg0: i32, %arg1: i32, %arg2: i32) -> (i32, i32) {
    %c0_i32 = arith.constant 0 : i32
    %c0_i32_0 = arith.constant 0 : i32
    return %c0_i32, %arg0 : i32, i32
  }
  func.func @transform_8(%arg0: i32, %arg1: i32, %arg2: i32) -> (i32, i32) {
    %c0_i32 = arith.constant 0 : i32
    %c0_i32_0 = arith.constant 0 : i32
    return %c0_i32, %arg0 : i32, i32
  }
  func.func @transform_9(%arg0: i32, %arg1: i32, %arg2: i32) -> (i32, i32, i32) {
    %c0_i32 = arith.constant 0 : i32
    return %arg1, %arg2, %arg0 : i32, i32, i32
  }
  func.func @transform_10(%arg0: i32, %arg1: i32, %arg2: i32) -> (i32, i32, i32) {
    %c0_i32 = arith.constant 0 : i32
    return %arg1, %arg2, %arg0 : i32, i32, i32
  }
  func.func @transform_11(%arg0: i32, %arg1: i32, %arg2: i32) -> (i32, i32, i32) {
    %c0_i32 = arith.constant 0 : i32
    return %arg1, %arg2, %arg0 : i32, i32, i32
  }
}

</mosaic_0001>

<llo_original>
// kernel: tpu_custom_call.1
$region0: #{tpu_custom_call.1}
  #allocation0 [shape = 'u32[]', space=smem, size = 0x4, offset = 0x4, fixed_abs, tag = 'smem constant byte address 0x4 - core index']
  #allocation1 [shape = 'u32[72,128]{1,0:T(1,128)}', space=vmem, size = 0x9000, scoped, tag = 'internal scratch']
  %s0 = inlined_call_operand.hbm [shape: f32[2,8,32], index: 0, kind: input, shape index: {}]
  %s1 = inlined_call_operand.hbm [shape: f32[2,8,32], index: 1, kind: input, shape index: {}]
  %s2 = inlined_call_operand.hbm [shape: f32[2,8,32], index: 2, kind: input, shape index: {}]
  %s3 = inlined_call_operand.hbm [shape: bf16[32,32], index: 3, kind: input, shape index: {}]
  %s4 = inlined_call_operand.hbm [shape: bf16[32,32], index: 4, kind: input, shape index: {}]
  %s5 = inlined_call_operand.hbm [shape: bf16[32,32], index: 5, kind: input, shape index: {}]
  %s6 = inlined_call_operand.vmem [shape: f32[1,32], index: 6, kind: input, shape index: {}]
  %s7 = inlined_call_operand.vmem [shape: f32[1,32], index: 7, kind: input, shape index: {}]
  %s8 = inlined_call_operand.vmem [shape: f32[1,32], index: 8, kind: input, shape index: {}]
  %s9 = inlined_call_operand.hbm [shape: bf16[2,8,32], index: 9, kind: output, shape index: {0}]
  %s10 = inlined_call_operand.hbm [shape: bf16[2,8,32], index: 10, kind: output, shape index: {1}]
  %s11 = inlined_call_operand.hbm [shape: bf16[2,8,32], index: 11, kind: output, shape index: {2}]
  %12 = xla_tuple %s9, %s10, %s11
  %s13 = sld [smem:[#allocation0]]
  $region109: #{tpu_custom_call.1} parent=0
    _
  %s15 = ssub.s32 1, %s13
  %s16 = scalar_select 0, %s15, %s13
  $region1: #{tpu_custom_call.1} parent=0
    #allocation2 [shape = 'u8[8192]{0}', space=vmem, size = 0x2000, scoped, tag = 'input window, operand 0']
    #allocation3 [shape = 's32[2]{0}', space=sflag, size = 0x8, scoped, tag = 'scoped memory for tpu_custom_call.1']
    #allocation4 [shape = 's32[2]{0}', space=sflag, size = 0x8, scoped, tag = 'scoped memory for tpu_custom_call.1']
    #allocation5 [shape = 'u8[8192]{0}', space=vmem, size = 0x2000, scoped, tag = 'input window, operand 1']
    #allocation6 [shape = 's32[2]{0}', space=sflag, size = 0x8, scoped, tag = 'scoped memory for tpu_custom_call.1']
    #allocation7 [shape = 'u8[8192]{0}', space=vmem, size = 0x2000, scoped, tag = 'input window, operand 2']
    #allocation8 [shape = 'u8[8192]{0}', space=vmem, size = 0x2000, scoped, tag = 'input window, operand 3, single buffered']
    #allocation9 [shape = 's32[1]{0}', space=sflag, size = 0x4, scoped, tag = 'scoped memory for tpu_custom_call.1']
    #allocation10 [shape = 'u8[8192]{0}', space=vmem, size = 0x2000, scoped, tag = 'input window, operand 4, single buffered']
    #allocation11 [shape = 'u8[8192]{0}', space=vmem, size = 0x2000, scoped, tag = 'input window, operand 5, single buffered']
    #allocation12 [shape = 's32[1]{0}', space=sflag, size = 0x4, scoped, tag = 'scoped memory for tpu_custom_call.1']
    #allocation13 [shape = 'u8[4096]{0}', space=vmem, size = 0x1000, scoped, tag = 'output window, operand 0']
    #allocation14 [shape = 'u8[4096]{0}', space=vmem, size = 0x1000, scoped, tag = 'output window, operand 1']
    #allocation15 [shape = 's32[2]{0}', space=sflag, size = 0x8, scoped, tag = 'scoped memory for tpu_custom_call.1']
    #allocation16 [shape = 'u8[4096]{0}', space=vmem, size = 0x1000, scoped, tag = 'output window, operand 2']
    %17 = vsyncpa [#allocation3], 0
    %s18 = scalar_lea.sflag [#allocation3], 1
    %19 = vsyncpa %s18, 0
    %20 = vsyncpa [#allocation6], 0
    %s21 = scalar_lea.sflag [#allocation6], 1
    %22 = vsyncpa %s21, 0
    %23 = vsyncpa [#allocation9], 0
    %24 = vsyncpa [#allocation12], 0
    %25 = vsyncpa [#allocation4], 0
    %s26 = scalar_lea.sflag [#allocation4], 1
    %27 = vsyncpa %s26, 0
    %28 = vsyncpa [#allocation15], 0
    %s29 = scalar_lea.sflag [#allocation15], 1
    %30 = vsyncpa %s29, 0
    loop: start=0, step=1, limit=4
    $region2: #{tpu_custom_call.1} parent=1 // loop_pre_header
      _
    $region3: #{tpu_custom_call.1} parent=1 // loop_header
      %s32 = sphi 0, %s36
      %p33 = scmp.ge.s32.totalorder %s32, 4
      %s39 = sphi 0, %s58
      %s40 = sphi 0, %s54
      %s41 = sphi 0, %s50
      %s42 = sphi 0, %s39
      %s43 = sphi 0, %s40
      %s44 = sphi 0, %s41
      %s45 = sphi 0, %s42
      %s46 = sphi 0, %s43
      %s47 = sphi 0, %s44
      %s63 = sphi 0, %s65
      %s66 = sphi 0, %s63
      %s67 = sphi 0, %s66
      %s83 = sphi 0, %s67
      %s91 = sphi 0, %s93
      %s94 = sphi 0, %s91
      %s95 = sphi 0, %s94
      %s111 = sphi 0, %s95
      %s119 = sphi 0, %s121
      %s122 = sphi 0, %s119
      %s123 = sphi 0, %s122
      %s139 = sphi 0, %s123
      %s145 = sphi 0, %s147
      %s148 = sphi 0, %s145
      %s149 = sphi 0, %s148
      %s165 = sphi 0, %s149
      %s171 = sphi 0, %s173
      %s174 = sphi 0, %s171
      %s175 = sphi 0, %s174
      %s191 = sphi 0, %s175
      %s197 = sphi 0, %s199
      %s200 = sphi 0, %s197
      %s201 = sphi 0, %s200
      %s217 = sphi 0, %s201
      %s223 = sphi 0, %s225
      %s226 = sphi 0, %s223
      %s227 = sphi 0, %s226
      %s243 = sphi 0, %s227
      %s249 = sphi 0, %s251
      %s252 = sphi 0, %s249
      %s253 = sphi 0, %s252
      %s269 = sphi 0, %s253
      %s275 = sphi 0, %s277
      %s278 = sphi 0, %s275
      %s279 = sphi 0, %s278
      %s295 = sphi 0, %s279
      %s305 = sphi 0, %s307
      %s308 = sphi 0, %s305
      %s309 = sphi 0, %s308
      %s325 = sphi 0, %s309
      %s335 = sphi 0, %s337
      %s338 = sphi 0, %s335
      %s339 = sphi 0, %s338
      %s355 = sphi 0, %s339
      %s365 = sphi 0, %s367
      %s368 = sphi 0, %s365
      %s369 = sphi 0, %s368
      %s385 = sphi 0, %s369
    $region4: #{tpu_custom_call.1} parent=1 // loop_header_branch
      %35 = sbr.rel (%p33) target = $region8
    $region5: #{tpu_custom_call.1} parent=1 // loop_body
      %s37 = ssub.s32 %s32, 1
      %s38 = ssub.s32 %s32, 2
      %s48 = sadd.s32 1, %s41
      %p49 = scmp.ge.s32.totalorder %s48, 1
      %s50 = scalar_select %p49, 0, %s48
      %s51 = sadd.s32 1, %s40
      %s52 = scalar_select %p49, %s51, %s40
      %p53 = scmp.ge.s32.totalorder %s52, 2
      %s54 = scalar_select %p53, 0, %s52
      %s55 = sadd.s32 1, %s39
      %s56 = scalar_select %p53, %s55, %s39
      %p57 = scmp.ge.s32.totalorder %s56, 1
      %s58 = scalar_select %p57, 0, %s56
      %s59 = ssub.s32 %s40, %s54
      %s60 = ssub.s32 %s41, %s50
      %s61 = sor.u32 %s59, %s60
      %p62 = scmp.eq.s32.totalorder %s61, 0
      %s64 = sadd.s32 %s63, 1
      %s65 = scalar_select %p62, %s63, %s64
      %p68 = pneg %p62
      %p69 = scmp.eq.s32.totalorder %s32, 1
      %p70 = por %p68, %p69
      %p71 = scmp.ne.s32.totalorder %s63, %s66
      %p72 = scmp.eq.s32.totalorder %s32, 0
      %p73 = por %p71, %p72
      %p74 = scmp.ne.s32.totalorder %s63, %s66
      %p75 = scmp.eq.s32.totalorder %s37, 1
      %p76 = por %p74, %p75
      %p77 = scmp.ne.s32.totalorder %s66, %s67
      %p78 = scmp.eq.s32.totalorder %s37, 0
      %p79 = por %p77, %p78
      %p80 = scmp.ne.s32.totalorder %s66, %s67
      %p81 = scmp.eq.s32.totalorder %s38, 1
      %p82 = por %p80, %p81
      %p84 = scmp.ne.s32.totalorder %s67, %s83
      %p85 = scmp.eq.s32.totalorder %s38, 0
      %p86 = por %p84, %p85
      %s87 = ssub.s32 %s40, %s54
      %s88 = ssub.s32 %s41, %s50
      %s89 = sor.u32 %s87, %s88
      %p90 = scmp.eq.s32.totalorder %s89, 0
      %s92 = sadd.s32 %s91, 1
      %s93 = scalar_select %p90, %s91, %s92
      %p96 = pneg %p90
      %p97 = scmp.eq.s32.totalorder %s32, 1
      %p98 = por %p96, %p97
      %p99 = scmp.ne.s32.totalorder %s91, %s94
      %p100 = scmp.eq.s32.totalorder %s32, 0
      %p101 = por %p99, %p100
      %p102 = scmp.ne.s32.totalorder %s91, %s94
      %p103 = scmp.eq.s32.totalorder %s37, 1
      %p104 = por %p102, %p103
      %p105 = scmp.ne.s32.totalorder %s94, %s95
      %p106 = scmp.eq.s32.totalorder %s37, 0
      %p107 = por %p105, %p106
      %p108 = scmp.ne.s32.totalorder %s94, %s95
      %p109 = scmp.eq.s32.totalorder %s38, 1
      %p110 = por %p108, %p109
      %p112 = scmp.ne.s32.totalorder %s95, %s111
      %p113 = scmp.eq.s32.totalorder %s38, 0
      %p114 = por %p112, %p113
      %s115 = ssub.s32 %s40, %s54
      %s116 = ssub.s32 %s41, %s50
      %s117 = sor.u32 %s115, %s116
      %p118 = scmp.eq.s32.totalorder %s117, 0
      %s120 = sadd.s32 %s119, 1
      %s121 = scalar_select %p118, %s119, %s120
      %p124 = pneg %p118
      %p125 = scmp.eq.s32.totalorder %s32, 1
      %p126 = por %p124, %p125
      %p127 = scmp.ne.s32.totalorder %s119, %s122
      %p128 = scmp.eq.s32.totalorder %s32, 0
      %p129 = por %p127, %p128
      %p130 = scmp.ne.s32.totalorder %s119, %s122
      %p131 = scmp.eq.s32.totalorder %s37, 1
      %p132 = por %p130, %p131
      %p133 = scmp.ne.s32.totalorder %s122, %s123
      %p134 = scmp.eq.s32.totalorder %s37, 0
      %p135 = por %p133, %p134
      %p136 = scmp.ne.s32.totalorder %s122, %s123
      %p137 = scmp.eq.s32.totalorder %s38, 1
      %p138 = por %p136, %p137
      %p140 = scmp.ne.s32.totalorder %s123, %s139
      %p141 = scmp.eq.s32.totalorder %s38, 0
      %p142 = por %p140, %p141
      %s143 = ssub.s32 %s39, %s58
      %p144 = scmp.eq.s32.totalorder %s143, 0
      %s146 = sadd.s32 %s145, 1
      %s147 = scalar_select %p144, %s145, %s146
      %p150 = pneg %p144
      %p151 = scmp.eq.s32.totalorder %s32, 1
      %p152 = por %p150, %p151
      %p153 = scmp.ne.s32.totalorder %s145, %s148
      %p154 = scmp.eq.s32.totalorder %s32, 0
      %p155 = por %p153, %p154
      %p156 = scmp.ne.s32.totalorder %s145, %s148
      %p157 = scmp.eq.s32.totalorder %s37, 1
      %p158 = por %p156, %p157
      %p159 = scmp.ne.s32.totalorder %s148, %s149
      %p160 = scmp.eq.s32.totalorder %s37, 0
      %p161 = por %p159, %p160
      %p162 = scmp.ne.s32.totalorder %s148, %s149
      %p163 = scmp.eq.s32.totalorder %s38, 1
      %p164 = por %p162, %p163
      %p166 = scmp.ne.s32.totalorder %s149, %s165
      %p167 = scmp.eq.s32.totalorder %s38, 0
      %p168 = por %p166, %p167
      %s169 = ssub.s32 %s39, %s58
      %p170 = scmp.eq.s32.totalorder %s169, 0
      %s172 = sadd.s32 %s171, 1
      %s173 = scalar_select %p170, %s171, %s172
      %p176 = pneg %p170
      %p177 = scmp.eq.s32.totalorder %s32, 1
      %p178 = por %p176, %p177
      %p179 = scmp.ne.s32.totalorder %s171, %s174
      %p180 = scmp.eq.s32.totalorder %s32, 0
      %p181 = por %p179, %p180
      %p182 = scmp.ne.s32.totalorder %s171, %s174
      %p183 = scmp.eq.s32.totalorder %s37, 1
      %p184 = por %p182, %p183
      %p185 = scmp.ne.s32.totalorder %s174, %s175
      %p186 = scmp.eq.s32.totalorder %s37, 0
      %p187 = por %p185, %p186
      %p188 = scmp.ne.s32.totalorder %s174, %s175
      %p189 = scmp.eq.s32.totalorder %s38, 1
      %p190 = por %p188, %p189
      %p192 = scmp.ne.s32.totalorder %s175, %s191
      %p193 = scmp.eq.s32.totalorder %s38, 0
      %p194 = por %p192, %p193
      %s195 = ssub.s32 %s39, %s58
      %p196 = scmp.eq.s32.totalorder %s195, 0
      %s198 = sadd.s32 %s197, 1
      %s199 = scalar_select %p196, %s197, %s198
      %p202 = pneg %p196
      %p203 = scmp.eq.s32.totalorder %s32, 1
      %p204 = por %p202, %p203
      %p205 = scmp.ne.s32.totalorder %s197, %s200
      %p206 = scmp.eq.s32.totalorder %s32, 0
      %p207 = por %p205, %p206
      %p208 = scmp.ne.s32.totalorder %s197, %s200
      %p209 = scmp.eq.s32.totalorder %s37, 1
      %p210 = por %p208, %p209
      %p211 = scmp.ne.s32.totalorder %s200, %s201
      %p212 = scmp.eq.s32.totalorder %s37, 0
      %p213 = por %p211, %p212
      %p214 = scmp.ne.s32.totalorder %s200, %s201
      %p215 = scmp.eq.s32.totalorder %s38, 1
      %p216 = por %p214, %p215
      %p218 = scmp.ne.s32.totalorder %s201, %s217
      %p219 = scmp.eq.s32.totalorder %s38, 0
      %p220 = por %p218, %p219
      %s221 = ssub.s32 %s39, %s58
      %p222 = scmp.eq.s32.totalorder %s221, 0
      %s224 = sadd.s32 %s223, 1
      %s225 = scalar_select %p222, %s223, %s224
      %p228 = pneg %p222
      %p229 = scmp.eq.s32.totalorder %s32, 1
      %p230 = por %p228, %p229
      %p231 = scmp.ne.s32.totalorder %s223, %s226
      %p232 = scmp.eq.s32.totalorder %s32, 0
      %p233 = por %p231, %p232
      %p234 = scmp.ne.s32.totalorder %s223, %s226
      %p235 = scmp.eq.s32.totalorder %s37, 1
      %p236 = por %p234, %p235
      %p237 = scmp.ne.s32.totalorder %s226, %s227
      %p238 = scmp.eq.s32.totalorder %s37, 0
      %p239 = por %p237, %p238
      %p240 = scmp.ne.s32.totalorder %s226, %s227
      %p241 = scmp.eq.s32.totalorder %s38, 1
      %p242 = por %p240, %p241
      %p244 = scmp.ne.s32.totalorder %s227, %s243
      %p245 = scmp.eq.s32.totalorder %s38, 0
      %p246 = por %p244, %p245
      %s247 = ssub.s32 %s39, %s58
      %p248 = scmp.eq.s32.totalorder %s247, 0
      %s250 = sadd.s32 %s249, 1
      %s251 = scalar_select %p248, %s249, %s250
      %p254 = pneg %p248
      %p255 = scmp.eq.s32.totalorder %s32, 1
      %p256 = por %p254, %p255
      %p257 = scmp.ne.s32.totalorder %s249, %s252
      %p258 = scmp.eq.s32.totalorder %s32, 0
      %p259 = por %p257, %p258
      %p260 = scmp.ne.s32.totalorder %s249, %s252
      %p261 = scmp.eq.s32.totalorder %s37, 1
      %p262 = por %p260, %p261
      %p263 = scmp.ne.s32.totalorder %s252, %s253
      %p264 = scmp.eq.s32.totalorder %s37, 0
      %p265 = por %p263, %p264
      %p266 = scmp.ne.s32.totalorder %s252, %s253
      %p267 = scmp.eq.s32.totalorder %s38, 1
      %p268 = por %p266, %p267
      %p270 = scmp.ne.s32.totalorder %s253, %s269
      %p271 = scmp.eq.s32.totalorder %s38, 0
      %p272 = por %p270, %p271
      %s273 = ssub.s32 %s39, %s58
      %p274 = scmp.eq.s32.totalorder %s273, 0
      %s276 = sadd.s32 %s275, 1
      %s277 = scalar_select %p274, %s275, %s276
      %p280 = pneg %p274
      %p281 = scmp.eq.s32.totalorder %s32, 1
      %p282 = por %p280, %p281
      %p283 = scmp.ne.s32.totalorder %s275, %s278
      %p284 = scmp.eq.s32.totalorder %s32, 0
      %p285 = por %p283, %p284
      %p286 = scmp.ne.s32.totalorder %s275, %s278
      %p287 = scmp.eq.s32.totalorder %s37, 1
      %p288 = por %p286, %p287
      %p289 = scmp.ne.s32.totalorder %s278, %s279
      %p290 = scmp.eq.s32.totalorder %s37, 0
      %p291 = por %p289, %p290
      %p292 = scmp.ne.s32.totalorder %s278, %s279
      %p293 = scmp.eq.s32.totalorder %s38, 1
      %p294 = por %p292, %p293
      %p296 = scmp.ne.s32.totalorder %s279, %s295
      %p297 = scmp.eq.s32.totalorder %s38, 0
      %p298 = por %p296, %p297
      %s299 = ssub.s32 %s40, %s54
      %s300 = ssub.s32 %s41, %s50
      %s301 = sor.u32 %s299, %s300
      %s302 = ssub.s32 %s39, %s58
      %s303 = sor.u32 %s301, %s302
      %p304 = scmp.eq.s32.totalorder %s303, 0
      %s306 = sadd.s32 %s305, 1
      %s307 = scalar_select %p304, %s305, %s306
      %p310 = pneg %p304
      %p311 = scmp.eq.s32.totalorder %s32, 1
      %p312 = por %p310, %p311
      %p313 = scmp.ne.s32.totalorder %s305, %s308
      %p314 = scmp.eq.s32.totalorder %s32, 0
      %p315 = por %p313, %p314
      %p316 = scmp.ne.s32.totalorder %s305, %s308
      %p317 = scmp.eq.s32.totalorder %s37, 1
      %p318 = por %p316, %p317
      %p319 = scmp.ne.s32.totalorder %s308, %s309
      %p320 = scmp.eq.s32.totalorder %s37, 0
      %p321 = por %p319, %p320
      %p322 = scmp.ne.s32.totalorder %s308, %s309
      %p323 = scmp.eq.s32.totalorder %s38, 1
      %p324 = por %p322, %p323
      %p326 = scmp.ne.s32.totalorder %s309, %s325
      %p327 = scmp.eq.s32.totalorder %s38, 0
      %p328 = por %p326, %p327
      %s329 = ssub.s32 %s40, %s54
      %s330 = ssub.s32 %s41, %s50
      %s331 = sor.u32 %s329, %s330
      %s332 = ssub.s32 %s39, %s58
      %s333 = sor.u32 %s331, %s332
      %p334 = scmp.eq.s32.totalorder %s333, 0
      %s336 = sadd.s32 %s335, 1
      %s337 = scalar_select %p334, %s335, %s336
      %p340 = pneg %p334
      %p341 = scmp.eq.s32.totalorder %s32, 1
      %p342 = por %p340, %p341
      %p343 = scmp.ne.s32.totalorder %s335, %s338
      %p344 = scmp.eq.s32.totalorder %s32, 0
      %p345 = por %p343, %p344
      %p346 = scmp.ne.s32.totalorder %s335, %s338
      %p347 = scmp.eq.s32.totalorder %s37, 1
      %p348 = por %p346, %p347
      %p349 = scmp.ne.s32.totalorder %s338, %s339
      %p350 = scmp.eq.s32.totalorder %s37, 0
      %p351 = por %p349, %p350
      %p352 = scmp.ne.s32.totalorder %s338, %s339
      %p353 = scmp.eq.s32.totalorder %s38, 1
      %p354 = por %p352, %p353
      %p356 = scmp.ne.s32.totalorder %s339, %s355
      %p357 = scmp.eq.s32.totalorder %s38, 0
      %p358 = por %p356, %p357
      %s359 = ssub.s32 %s40, %s54
      %s360 = ssub.s32 %s41, %s50
      %s361 = sor.u32 %s359, %s360
      %s362 = ssub.s32 %s39, %s58
      %s363 = sor.u32 %s361, %s362
      %p364 = scmp.eq.s32.totalorder %s363, 0
      %s366 = sadd.s32 %s365, 1
      %s367 = scalar_select %p364, %s365, %s366
      %p370 = pneg %p364
      %p371 = scmp.eq.s32.totalorder %s32, 1
      %p372 = por %p370, %p371
      %p373 = scmp.ne.s32.totalorder %s365, %s368
      %p374 = scmp.eq.s32.totalorder %s32, 0
      %p375 = por %p373, %p374
      %p376 = scmp.ne.s32.totalorder %s365, %s368
      %p377 = scmp.eq.s32.totalorder %s37, 1
      %p378 = por %p376, %p377
      %p379 = scmp.ne.s32.totalorder %s368, %s369
      %p380 = scmp.eq.s32.totalorder %s37, 0
      %p381 = por %p379, %p380
      %p382 = scmp.ne.s32.totalorder %s368, %s369
      %p383 = scmp.eq.s32.totalorder %s38, 1
      %p384 = por %p382, %p383
      %p386 = scmp.ne.s32.totalorder %s369, %s385
      %p387 = scmp.eq.s32.totalorder %s38, 0
      %p388 = por %p386, %p387
      %p389 = scmp.le.s32.totalorder 1, %s32
      %p390 = scmp.lt.s32.totalorder %s32, 3
      %p391 = pnand %p389, %p390
      %p392 = pneg %p391
      // Predicated region
      $region9: #{tpu_custom_call.1} parent=5 // pred_check
        _
      $region10: #{tpu_custom_call.1} parent=5 // pred_check_branch
        %394 = sbr.rel (%p391) target = $region12
      $region11: #{tpu_custom_call.1} parent=5 // pred_region
        %s395 = ssub.s32 %s32, 1
        // Predicated region
        $region13: #{tpu_custom_call.1} parent=11 // pred_check
          %p396 = pneg %p161
        $region14: #{tpu_custom_call.1} parent=11 // pred_check_branch
          %398 = sbr.rel (%p396) target = $region16
        $region15: #{tpu_custom_call.1} parent=11 // pred_region
          %400 = vsyncadd [#allocation9], 0
          %s401 = smul.addr %s42, 4
          %s402 = scalar_lea.hbm %s3, %s401
          %s403 = sshll.u32 %s402, 4
          %s404 = int_to_ptr.hbm [resolvable:$true] %s403
          %s405 = sshll.u32 [#allocation8], 4
          %s406 = int_to_ptr.vmem [resolvable:$true] %s405
          %411 = dma.hbm_to_vmem [thread:$0]  %s404, 256, %s406, [#allocation9], 64, 64, 4
        $region16: #{tpu_custom_call.1} parent=11 // pred_fallthru
          _
        // Predicated region
        $region17: #{tpu_custom_call.1} parent=11 // pred_check
          %p412 = pneg %p187
        $region18: #{tpu_custom_call.1} parent=11 // pred_check_branch
          %414 = sbr.rel (%p412) target = $region20
        $region19: #{tpu_custom_call.1} parent=11 // pred_region
          %416 = vsyncadd [#allocation9], 0
          %s417 = smul.addr %s42, 4
          %s418 = scalar_lea.hbm %s4, %s417
          %s419 = sshll.u32 %s418, 4
          %s420 = int_to_ptr.hbm [resolvable:$true] %s419
          %s421 = sshll.u32 [#allocation10], 4
          %s422 = int_to_ptr.vmem [resolvable:$true] %s421
          %427 = dma.hbm_to_vmem [thread:$0]  %s420, 256, %s422, [#allocation9], 64, 64, 4
        $region20: #{tpu_custom_call.1} parent=11 // pred_fallthru
          _
        // Predicated region
        $region21: #{tpu_custom_call.1} parent=11 // pred_check
          %p428 = pneg %p213
        $region22: #{tpu_custom_call.1} parent=11 // pred_check_branch
          %430 = sbr.rel (%p428) target = $region24
        $region23: #{tpu_custom_call.1} parent=11 // pred_region
          %432 = vsyncadd [#allocation12], 0
          %s433 = smul.addr %s42, 4
          %s434 = scalar_lea.hbm %s5, %s433
          %s435 = sshll.u32 %s434, 4
          %s436 = int_to_ptr.hbm [resolvable:$true] %s435
          %s437 = sshll.u32 [#allocation11], 4
          %s438 = int_to_ptr.vmem [resolvable:$true] %s437
          %443 = dma.hbm_to_vmem [thread:$0]  %s436, 256, %s438, [#allocation12], 64, 64, 4
        $region24: #{tpu_custom_call.1} parent=11 // pred_fallthru
          _
        // Predicated region
        $region25: #{tpu_custom_call.1} parent=11 // pred_check
          %p444 = pneg %p239
        $region26: #{tpu_custom_call.1} parent=11 // pred_check_branch
          %446 = sbr.rel (%p444) target = $region28
        $region27: #{tpu_custom_call.1} parent=11 // pred_region
          %p447 = scmp.lt.s32.totalorder %s42, 0
          %s448 = scalar_select %p447, %s42, 0
          %s449 = scalar_lea.vmem %s6, %s448
        $region28: #{tpu_custom_call.1} parent=11 // pred_fallthru
          _
        // Predicated region
        $region29: #{tpu_custom_call.1} parent=11 // pred_check
          %p450 = pneg %p265
        $region30: #{tpu_custom_call.1} parent=11 // pred_check_branch
          %452 = sbr.rel (%p450) target = $region32
        $region31: #{tpu_custom_call.1} parent=11 // pred_region
          %p453 = scmp.lt.s32.totalorder %s42, 0
          %s454 = scalar_select %p453, %s42, 0
          %s455 = scalar_lea.vmem %s7, %s454
        $region32: #{tpu_custom_call.1} parent=11 // pred_fallthru
          _
        // Predicated region
        $region33: #{tpu_custom_call.1} parent=11 // pred_check
          %p456 = pneg %p291
        $region34: #{tpu_custom_call.1} parent=11 // pred_check_branch
          %458 = sbr.rel (%p456) target = $region36
        $region35: #{tpu_custom_call.1} parent=11 // pred_region
          %p459 = scmp.lt.s32.totalorder %s42, 0
          %s460 = scalar_select %p459, %s42, 0
          %s461 = scalar_lea.vmem %s8, %s460
        $region36: #{tpu_custom_call.1} parent=11 // pred_fallthru
          _
      $region12: #{tpu_custom_call.1} parent=5 // pred_fallthru
        _
      %p462 = scmp.lt.s32.totalorder %s32, 2
      // Predicated region
      $region37: #{tpu_custom_call.1} parent=5 // pred_check
        %p463 = pneg %p462
      $region38: #{tpu_custom_call.1} parent=5 // pred_check_branch
        %465 = sbr.rel (%p463) target = $region40
      $region39: #{tpu_custom_call.1} parent=5 // pred_region
        // Predicated region
        $region41: #{tpu_custom_call.1} parent=39 // pred_check
          %p466 = pneg %p73
        $region42: #{tpu_custom_call.1} parent=39 // pred_check_branch
          %468 = sbr.rel (%p466) target = $region44
        $region43: #{tpu_custom_call.1} parent=39 // pred_region
          %s469 = sand.u32 %s63, 1
          %s470 = scalar_lea.sflag [#allocation3], %s469
          %s471 = sand.u32 %s63, 1
          %s472 = smul.addr %s471, 8
          %s473 = scalar_lea.vmem [#allocation2], %s472
          %475 = vsyncadd %s470, 0
          %s476 = sadd.s32 %s41, %s40
          %s477 = smul.addr %s476, 8
          %s478 = scalar_lea.hbm %s0, %s477
          %s480 = sshll.u32 %s478, 4
          %s481 = int_to_ptr.hbm [resolvable:$true] %s480
          %s482 = sshll.u32 %s473, 4
          %s483 = int_to_ptr.vmem [resolvable:$true] %s482
          %485 = dma.hbm_to_vmem [thread:$0]  %s481, 128, %s483, %s470
        $region44: #{tpu_custom_call.1} parent=39 // pred_fallthru
          _
        // Predicated region
        $region45: #{tpu_custom_call.1} parent=39 // pred_check
          %p486 = pneg %p101
        $region46: #{tpu_custom_call.1} parent=39 // pred_check_branch
          %488 = sbr.rel (%p486) target = $region48
        $region47: #{tpu_custom_call.1} parent=39 // pred_region
          %s489 = sand.u32 %s32, 1
          %s490 = scalar_lea.sflag [#allocation6], %s489
          %s491 = sand.u32 %s91, 1
          %s492 = smul.addr %s491, 8
          %s493 = scalar_lea.vmem [#allocation5], %s492
          %495 = vsyncadd %s490, 0
          %s496 = sadd.s32 %s41, %s40
          %s497 = smul.addr %s496, 8
          %s498 = scalar_lea.hbm %s1, %s497
          %s500 = sshll.u32 %s498, 4
          %s501 = int_to_ptr.hbm [resolvable:$true] %s500
          %s502 = sshll.u32 %s493, 4
          %s503 = int_to_ptr.vmem [resolvable:$true] %s502
          %505 = dma.hbm_to_vmem [thread:$0]  %s501, 128, %s503, %s490
        $region48: #{tpu_custom_call.1} parent=39 // pred_fallthru
          _
        // Predicated region
        $region49: #{tpu_custom_call.1} parent=39 // pred_check
          %p506 = pneg %p129
        $region50: #{tpu_custom_call.1} parent=39 // pred_check_branch
          %508 = sbr.rel (%p506) target = $region52
        $region51: #{tpu_custom_call.1} parent=39 // pred_region
          %s509 = sand.u32 %s32, 1
          %s510 = scalar_lea.sflag [#allocation6], %s509
          %s511 = sand.u32 %s119, 1
          %s512 = smul.addr %s511, 8
          %s513 = scalar_lea.vmem [#allocation7], %s512
          %515 = vsyncadd %s510, 0
          %s516 = sadd.s32 %s41, %s40
          %s517 = smul.addr %s516, 8
          %s518 = scalar_lea.hbm %s2, %s517
          %s520 = sshll.u32 %s518, 4
          %s521 = int_to_ptr.hbm [resolvable:$true] %s520
          %s522 = sshll.u32 %s513, 4
          %s523 = int_to_ptr.vmem [resolvable:$true] %s522
          %525 = dma.hbm_to_vmem [thread:$0]  %s521, 128, %s523, %s510
        $region52: #{tpu_custom_call.1} parent=39 // pred_fallthru
          _
      $region40: #{tpu_custom_call.1} parent=5 // pred_fallthru
        _
      %p526 = scmp.le.s32.totalorder 1, %s32
      %p527 = scmp.lt.s32.totalorder %s32, 3
      %p528 = pnand %p526, %p527
      %p529 = pneg %p528
      // Predicated region
      $region53: #{tpu_custom_call.1} parent=5 // pred_check
        _
      $region54: #{tpu_custom_call.1} parent=5 // pred_check_branch
        %531 = sbr.rel (%p528) target = $region56
      $region55: #{tpu_custom_call.1} parent=5 // pred_region
        %s532 = ssub.s32 %s32, 1
        %s533 = sand.u32 %s66, 1
        %s534 = scalar_lea.sflag [#allocation3], %s533
        %s535 = sand.u32 %s66, 1
        %s536 = smul.addr %s535, 8
        %s537 = scalar_lea.vmem [#allocation2], %s536
        // Predicated region
        $region57: #{tpu_custom_call.1} parent=55 // pred_check
          %p538 = pneg %p79
        $region58: #{tpu_custom_call.1} parent=55 // pred_check_branch
          %540 = sbr.rel (%p538) target = $region60
        $region59: #{tpu_custom_call.1} parent=55 // pred_region
          %542 = dma.done %s534, 128
        $region60: #{tpu_custom_call.1} parent=55 // pred_fallthru
          _
        %s543 = sand.u32 %s37, 1
        %s544 = scalar_lea.sflag [#allocation6], %s543
        %s545 = sand.u32 %s94, 1
        %s546 = smul.addr %s545, 8
        %s547 = scalar_lea.vmem [#allocation5], %s546
        // Predicated region
        $region61: #{tpu_custom_call.1} parent=55 // pred_check
          %p548 = pneg %p107
        $region62: #{tpu_custom_call.1} parent=55 // pred_check_branch
          %550 = sbr.rel (%p548) target = $region64
        $region63: #{tpu_custom_call.1} parent=55 // pred_region
          %552 = dma.done %s544, 128
        $region64: #{tpu_custom_call.1} parent=55 // pred_fallthru
          _
        %s553 = sand.u32 %s37, 1
        %s554 = scalar_lea.sflag [#allocation6], %s553
        %s555 = sand.u32 %s122, 1
        %s556 = smul.addr %s555, 8
        %s557 = scalar_lea.vmem [#allocation7], %s556
        // Predicated region
        $region65: #{tpu_custom_call.1} parent=55 // pred_check
          %p558 = pneg %p135
        $region66: #{tpu_custom_call.1} parent=55 // pred_check_branch
          %560 = sbr.rel (%p558) target = $region68
        $region67: #{tpu_custom_call.1} parent=55 // pred_region
          %562 = dma.done %s554, 128
        $region68: #{tpu_custom_call.1} parent=55 // pred_fallthru
          _
        // Predicated region
        $region69: #{tpu_custom_call.1} parent=55 // pred_check
          %p563 = pneg %p161
        $region70: #{tpu_custom_call.1} parent=55 // pred_check_branch
          %565 = sbr.rel (%p563) target = $region72
        $region71: #{tpu_custom_call.1} parent=55 // pred_region
          %567 = dma.done [#allocation9], 256
        $region72: #{tpu_custom_call.1} parent=55 // pred_fallthru
          _
        // Predicated region
        $region73: #{tpu_custom_call.1} parent=55 // pred_check
          %p568 = pneg %p187
        $region74: #{tpu_custom_call.1} parent=55 // pred_check_branch
          %570 = sbr.rel (%p568) target = $region76
        $region75: #{tpu_custom_call.1} parent=55 // pred_region
          %572 = dma.done [#allocation9], 256
        $region76: #{tpu_custom_call.1} parent=55 // pred_fallthru
          _
        // Predicated region
        $region77: #{tpu_custom_call.1} parent=55 // pred_check
          %p573 = pneg %p213
        $region78: #{tpu_custom_call.1} parent=55 // pred_check_branch
          %575 = sbr.rel (%p573) target = $region80
        $region79: #{tpu_custom_call.1} parent=55 // pred_region
          %577 = dma.done [#allocation12], 256
        $region80: #{tpu_custom_call.1} parent=55 // pred_fallthru
          _
        %s578 = sand.u32 %s66, 1
        %s579 = scalar_lea.sflag [#allocation3], %s578
        %s580 = sand.u32 %s66, 1
        %s581 = smul.addr %s580, 8
        %s582 = scalar_lea.vmem [#allocation2], %s581
        %p583 = pneg %p79
        %p584 = pneg %p76
        %s585 = sand.u32 %s37, 1
        %s586 = scalar_lea.sflag [#allocation6], %s585
        %s587 = sand.u32 %s94, 1
        %s588 = smul.addr %s587, 8
        %s589 = scalar_lea.vmem [#allocation5], %s588
        %p590 = pneg %p107
        %p591 = pneg %p104
        %s592 = sand.u32 %s37, 1
        %s593 = scalar_lea.sflag [#allocation6], %s592
        %s594 = sand.u32 %s122, 1
        %s595 = smul.addr %s594, 8
        %s596 = scalar_lea.vmem [#allocation7], %s595
        %p597 = pneg %p135
        %p598 = pneg %p132
        %p599 = pneg %p161
        %p600 = pneg %p158
        %p601 = pneg %p187
        %p602 = pneg %p184
        %p603 = pneg %p213
        %p604 = pneg %p210
        %p605 = scmp.lt.s32.totalorder %s42, 0
        %s606 = scalar_select %p605, %s42, 0
        %s607 = scalar_lea.vmem %s6, %s606
        %p608 = pneg %p239
        %p609 = pneg %p236
        %p610 = scmp.lt.s32.totalorder %s42, 0
        %s611 = scalar_select %p610, %s42, 0
        %s612 = scalar_lea.vmem %s7, %s611
        %p613 = pneg %p265
        %p614 = pneg %p262
        %p615 = scmp.lt.s32.totalorder %s42, 0
        %s616 = scalar_select %p615, %s42, 0
        %s617 = scalar_lea.vmem %s8, %s616
        %p618 = pneg %p291
        %p619 = pneg %p288
        %p620 = pneg %p321
        %p621 = pneg %p318
        %s622 = sand.u32 %s308, 1
        %s623 = scalar_lea.sflag [#allocation4], %s622
        %s624 = sand.u32 %s308, 1
        %s625 = smul.addr %s624, 4
        %s626 = scalar_lea.vmem [#allocation13], %s625
        %p627 = pneg %p351
        %p628 = pneg %p348
        %s629 = sand.u32 %s37, 1
        %s630 = scalar_lea.sflag [#allocation15], %s629
        %s631 = sand.u32 %s338, 1
        %s632 = smul.addr %s631, 4
        %s633 = scalar_lea.vmem [#allocation14], %s632
        %p634 = pneg %p381
        %p635 = pneg %p378
        %s636 = sand.u32 %s37, 1
        %s637 = scalar_lea.sflag [#allocation15], %s636
        %s638 = sand.u32 %s368, 1
        %s639 = smul.addr %s638, 4
        %s640 = scalar_lea.vmem [#allocation16], %s639
        %p641 = scmp.lt.s32.totalorder %s42, 0
        %s642 = scalar_select %p641, %s42, 0
        %s643 = scalar_lea.vmem %s6, %s642
        %p644 = scmp.lt.s32.totalorder %s42, 0
        %s645 = scalar_select %p644, %s42, 0
        %s646 = scalar_lea.vmem %s7, %s645
        %p647 = scmp.lt.s32.totalorder %s42, 0
        %s648 = scalar_select %p647, %s42, 0
        %s649 = scalar_lea.vmem %s8, %s648
        %v651 = vld [vmem:[%s537] sm:$0xff]
        %v652 = vpack.c.bf16 %v651, %v651
        %v653 = vld [vmem:[%s547] sm:$0xff]
        %v654 = vpack.c.bf16 %v653, %v653
        %v655 = vld [vmem:[%s557] sm:$0xff]
        %v656 = vpack.c.bf16 %v655, %v655
        %v657 = vld [vmem:[#allocation8] sm:$0xf]
        %v658 = vld [vmem:[#allocation8 + $0x4] sm:$0xf]
        %v659 = vld [vmem:[#allocation8 + $0x8] sm:$0xf]
        %v660 = vld [vmem:[#allocation8 + $0xc] sm:$0xf]
        %v661 = vld [vmem:[%s643] sm:$0x1]
        %v663 = vperm.slane %v661, 0
        %v669 = vunpack.c.l.b16 %v657
        %v670 = vunpack.c.l.b16 %v658
        %v671 = vunpack.c.l.b16 %v659
        %v672 = vunpack.c.l.b16 %v660
        %v673 = vpack.c.b16 %v670, %v669
        %v674 = vpack.c.b16 %v672, %v671
        %vm677 = vcmask 261120
        %v679 = vsel %vm677, %v652, 0
        %681 = vmatpush.bf16.msra.mxu0 0
        %682 = vmatpush.bf16.msra.mxu0 0
        %683 = vmatpush.bf16.msra.mxu0 0
        %684 = vmatpush.bf16.msra.mxu0 0
        %685 = vmatpush.bf16.msra.mxu0 0
        %686 = vmatpush.bf16.msra.mxu0 0
        %687 = vmatpush.bf16.msra.mxu0 %v674
        %688 = vmatpush.bf16.msra.mxu0 %v673
        %689 = vmatmul.bf16.gmra.mxu0 %v679
        %v690 = vpop.f32.mrf.mxu0
        %v691 = vadd.f32 %v663, %v690
        %v692 = vpop.f32.mrf.mxu0
        %693 = vdwg.mxu0
        %v694 = vpack.c.bf16 %v691, %v691
        %vm695 = vcmask 257024
        %696 = vst.msk [vmem:[%s626] sm:$0xf] %vm695, %v694
        %v697 = vld [vmem:[#allocation10] sm:$0xf]
        %v698 = vld [vmem:[#allocation10 + $0x4] sm:$0xf]
        %v699 = vld [vmem:[#allocation10 + $0x8] sm:$0xf]
        %v700 = vld [vmem:[#allocation10 + $0xc] sm:$0xf]
        %v701 = vld [vmem:[%s646] sm:$0x1]
        %v703 = vperm.slane %v701, 0
        %v709 = vunpack.c.l.b16 %v697
        %v710 = vunpack.c.l.b16 %v698
        %v711 = vunpack.c.l.b16 %v699
        %v712 = vunpack.c.l.b16 %v700
        %v713 = vpack.c.b16 %v710, %v709
        %v714 = vpack.c.b16 %v712, %v711
        %v718 = vsel %vm677, %v654, 0
        %720 = vmatpush.bf16.msra.mxu0 0
        %721 = vmatpush.bf16.msra.mxu0 0
        %722 = vmatpush.bf16.msra.mxu0 0
        %723 = vmatpush.bf16.msra.mxu0 0
        %724 = vmatpush.bf16.msra.mxu0 0
        %725 = vmatpush.bf16.msra.mxu0 0
        %726 = vmatpush.bf16.msra.mxu0 %v714
        %727 = vmatpush.bf16.msra.mxu0 %v713
        %728 = vmatmul.bf16.gmra.mxu0 %v718
        %v729 = vpop.f32.mrf.mxu0
        %v730 = vadd.f32 %v703, %v729
        %v731 = vpop.f32.mrf.mxu0
        %732 = vdwg.mxu0
        %v733 = vpack.c.bf16 %v730, %v730
        %734 = vst.msk [vmem:[%s633] sm:$0xf] %vm695, %v733
        %v735 = vld [vmem:[#allocation11] sm:$0xf]
        %v736 = vld [vmem:[#allocation11 + $0x4] sm:$0xf]
        %v737 = vld [vmem:[#allocation11 + $0x8] sm:$0xf]
        %v738 = vld [vmem:[#allocation11 + $0xc] sm:$0xf]
        %v739 = vld [vmem:[%s649] sm:$0x1]
        %v741 = vperm.slane %v739, 0
        %v747 = vunpack.c.l.b16 %v735
        %v748 = vunpack.c.l.b16 %v736
        %v749 = vunpack.c.l.b16 %v737
        %v750 = vunpack.c.l.b16 %v738
        %v751 = vpack.c.b16 %v748, %v747
        %v752 = vpack.c.b16 %v750, %v749
        %v756 = vsel %vm677, %v656, 0
        %758 = vmatpush.bf16.msra.mxu0 0
        %759 = vmatpush.bf16.msra.mxu0 0
        %760 = vmatpush.bf16.msra.mxu0 0
        %761 = vmatpush.bf16.msra.mxu0 0
        %762 = vmatpush.bf16.msra.mxu0 0
        %763 = vmatpush.bf16.msra.mxu0 0
        %764 = vmatpush.bf16.msra.mxu0 %v752
        %765 = vmatpush.bf16.msra.mxu0 %v751
        %766 = vmatmul.bf16.gmra.mxu0 %v756
        %v767 = vpop.f32.mrf.mxu0
        %v768 = vadd.f32 %v741, %v767
        %v769 = vpop.f32.mrf.mxu0
        %770 = vdwg.mxu0
        %v771 = vpack.c.bf16 %v768, %v768
        %772 = vst.msk [vmem:[%s640] sm:$0xf] %vm695, %v771
        %s773 = sand.u32 %s308, 1
        %s774 = scalar_lea.sflag [#allocation4], %s773
        %s775 = sand.u32 %s308, 1
        %s776 = smul.addr %s775, 4
        %s777 = scalar_lea.vmem [#allocation13], %s776
        %s778 = sand.u32 %s37, 1
        %s779 = scalar_lea.sflag [#allocation15], %s778
        %s780 = sand.u32 %s338, 1
        %s781 = smul.addr %s780, 4
        %s782 = scalar_lea.vmem [#allocation14], %s781
        %s783 = sand.u32 %s37, 1
        %s784 = scalar_lea.sflag [#allocation15], %s783
        %s785 = sand.u32 %s368, 1
        %s786 = smul.addr %s785, 4
        %s787 = scalar_lea.vmem [#allocation16], %s786
        // Predicated region
        $region81: #{tpu_custom_call.1} parent=55 // pred_check
          %p788 = pneg %p318
        $region82: #{tpu_custom_call.1} parent=55 // pred_check_branch
          %790 = sbr.rel (%p788) target = $region84
        $region83: #{tpu_custom_call.1} parent=55 // pred_region
          %792 = vsyncadd %s774, 0
          %s793 = sadd.s32 %s42, %s44
          %s794 = sadd.s32 %s793, %s43
          %s795 = smul.addr %s794, 4
          %s796 = scalar_lea.hbm %s9, %s795
          %s798 = sshll.u32 %s777, 4
          %s799 = int_to_ptr.vmem [resolvable:$true] %s798
          %s800 = sshll.u32 %s796, 4
          %s801 = int_to_ptr.hbm [resolvable:$true] %s800
          %803 = dma.vmem_to_hbm [thread:$0]  %s799, 64, %s801, %s774
        $region84: #{tpu_custom_call.1} parent=55 // pred_fallthru
          _
        // Predicated region
        $region85: #{tpu_custom_call.1} parent=55 // pred_check
          %p804 = pneg %p348
        $region86: #{tpu_custom_call.1} parent=55 // pred_check_branch
          %806 = sbr.rel (%p804) target = $region88
        $region87: #{tpu_custom_call.1} parent=55 // pred_region
          %808 = vsyncadd %s779, 0
          %s809 = sadd.s32 %s42, %s44
          %s810 = sadd.s32 %s809, %s43
          %s811 = smul.addr %s810, 4
          %s812 = scalar_lea.hbm %s10, %s811
          %s814 = sshll.u32 %s782, 4
          %s815 = int_to_ptr.vmem [resolvable:$true] %s814
          %s816 = sshll.u32 %s812, 4
          %s817 = int_to_ptr.hbm [resolvable:$true] %s816
          %819 = dma.vmem_to_hbm [thread:$0]  %s815, 64, %s817, %s779
        $region88: #{tpu_custom_call.1} parent=55 // pred_fallthru
          _
        // Predicated region
        $region89: #{tpu_custom_call.1} parent=55 // pred_check
          %p820 = pneg %p378
        $region90: #{tpu_custom_call.1} parent=55 // pred_check_branch
          %822 = sbr.rel (%p820) target = $region92
        $region91: #{tpu_custom_call.1} parent=55 // pred_region
          %824 = vsyncadd %s784, 0
          %s825 = sadd.s32 %s42, %s44
          %s826 = sadd.s32 %s825, %s43
          %s827 = smul.addr %s826, 4
          %s828 = scalar_lea.hbm %s11, %s827
          %s830 = sshll.u32 %s787, 4
          %s831 = int_to_ptr.vmem [resolvable:$true] %s830
          %s832 = sshll.u32 %s828, 4
          %s833 = int_to_ptr.hbm [resolvable:$true] %s832
          %835 = dma.vmem_to_hbm [thread:$0]  %s831, 64, %s833, %s784
        $region92: #{tpu_custom_call.1} parent=55 // pred_fallthru
          _
      $region56: #{tpu_custom_call.1} parent=5 // pred_fallthru
        _
      %p836 = scmp.le.s32.totalorder 2, %s32
      // Predicated region
      $region93: #{tpu_custom_call.1} parent=5 // pred_check
        %p837 = pneg %p836
      $region94: #{tpu_custom_call.1} parent=5 // pred_check_branch
        %839 = sbr.rel (%p837) target = $region96
      $region95: #{tpu_custom_call.1} parent=5 // pred_region
        %s840 = ssub.s32 %s32, 2
        // Predicated region
        $region97: #{tpu_custom_call.1} parent=95 // pred_check
          %p841 = pneg %p324
        $region98: #{tpu_custom_call.1} parent=95 // pred_check_branch
          %843 = sbr.rel (%p841) target = $region100
        $region99: #{tpu_custom_call.1} parent=95 // pred_region
          %s844 = sand.u32 %s309, 1
          %s845 = scalar_lea.sflag [#allocation4], %s844
          %s846 = sand.u32 %s309, 1
          %s847 = smul.addr %s846, 4
          %s848 = scalar_lea.vmem [#allocation13], %s847
          %850 = dma.done %s845, 64
        $region100: #{tpu_custom_call.1} parent=95 // pred_fallthru
          _
        // Predicated region
        $region101: #{tpu_custom_call.1} parent=95 // pred_check
          %p851 = pneg %p354
        $region102: #{tpu_custom_call.1} parent=95 // pred_check_branch
          %853 = sbr.rel (%p851) target = $region104
        $region103: #{tpu_custom_call.1} parent=95 // pred_region
          %s854 = sand.u32 %s38, 1
          %s855 = scalar_lea.sflag [#allocation15], %s854
          %s856 = sand.u32 %s339, 1
          %s857 = smul.addr %s856, 4
          %s858 = scalar_lea.vmem [#allocation14], %s857
          %860 = dma.done %s855, 64
        $region104: #{tpu_custom_call.1} parent=95 // pred_fallthru
          _
        // Predicated region
        $region105: #{tpu_custom_call.1} parent=95 // pred_check
          %p861 = pneg %p384
        $region106: #{tpu_custom_call.1} parent=95 // pred_check_branch
          %863 = sbr.rel (%p861) target = $region108
        $region107: #{tpu_custom_call.1} parent=95 // pred_region
          %s864 = sand.u32 %s38, 1
          %s865 = scalar_lea.sflag [#allocation15], %s864
          %s866 = sand.u32 %s369, 1
          %s867 = smul.addr %s866, 4
          %s868 = scalar_lea.vmem [#allocation16], %s867
          %870 = dma.done %s865, 64
        $region108: #{tpu_custom_call.1} parent=95 // pred_fallthru
          _
      $region96: #{tpu_custom_call.1} parent=5 // pred_fallthru
        _
    $region6: #{tpu_custom_call.1} parent=1 // loop_footer
      %s36 = sadd.s32 1, %s32
    $region7: #{tpu_custom_call.1} parent=1 // loop_footer_branch
      %31 = sbr.rel target = $region3
    $region8: #{tpu_custom_call.1} parent=1 // loop_exit
      _
    %871 = vsyncpa [#allocation3], 1
    %s872 = scalar_lea.sflag [#allocation3], 1
    %873 = vsyncpa %s872, 1
    %874 = vsyncpa [#allocation6], 1
    %s875 = scalar_lea.sflag [#allocation6], 1
    %876 = vsyncpa %s875, 1
    %877 = vsyncpa [#allocation9], 1
    %878 = vsyncpa [#allocation12], 1
    %879 = vsyncpa [#allocation4], 1
    %s880 = scalar_lea.sflag [#allocation4], 1
    %881 = vsyncpa %s880, 1
    %882 = vsyncpa [#allocation15], 1
    %s883 = scalar_lea.sflag [#allocation15], 1
    %884 = vsyncpa %s883, 1

</llo_original>
